<compile_context>
chip_gen: v7x
topology: tpu7x:2x2x1
jax: 0.10.0
libtpu: 0.0.40
codegen_flags: <defaults>
</compile_context>

<pallas_src>
import functools
import math

import jax
import jax.numpy as jnp
import numpy as np
from jax.experimental import pallas as pl
from jax.experimental.pallas import tpu as pltpu

_LANE = 128
_SUBLANE = 8
_MIB = 1024 * 1024


def _round_up(x, m):
    return ((x + m - 1) // m) * m


def _vmem_budget_bytes():
    """Per-generation usable VMEM budget (leave headroom for Mosaic scratch)."""
    cap = None
    try:
        info = pltpu.get_tpu_info()
        cap = int(getattr(info, "vmem_capacity_bytes", 0)) or None
    except Exception:
        cap = None
    if cap is None:
        return 48 * _MIB                                  # safe on every generation
    if cap <= 80 * _MIB:                                  # v7x-class (64 MiB physical)
        return max(32 * _MIB, min(cap - 16 * _MIB, 48 * _MIB))
    return min(cap - 24 * _MIB, 100 * _MIB)               # v5e / v6e (128 MiB physical)


def _merge_kernel(*refs, split_fc1, n_tiled):
    """refs = (inputs..., out_ref[, h_scratch]) depending on the configuration."""
    if n_tiled:
        *in_refs, o_ref, h_ref = refs
    else:
        *in_refs, o_ref = refs
        h_ref = None

    if split_fc1:
        x1_ref, x2_ref, w1a_ref, w1b_ref, b1_ref, w2_ref, b2_ref = in_refs
    else:
        x_ref, w1_ref, b1_ref, w2_ref, b2_ref = in_refs

    def fc1_relu():
        if split_fc1:
            h = jnp.dot(x1_ref[...].astype(w1a_ref.dtype), w1a_ref[...],
                        preferred_element_type=jnp.float32)
            h = h + jnp.dot(x2_ref[...].astype(w1b_ref.dtype), w1b_ref[...],
                            preferred_element_type=jnp.float32)
        else:
            h = jnp.dot(x_ref[...].astype(w1_ref.dtype), w1_ref[...],
                        preferred_element_type=jnp.float32)
        return jnp.maximum(h + b1_ref[...].astype(jnp.float32), 0.0)

    if n_tiled:
        # Hidden activations are computed once per batch tile (at the first
        # dim4 tile) and reused across the remaining dim4 tiles.
        @pl.when(pl.program_id(1) == 0)
        def _():
            h_ref[...] = fc1_relu()
        h = h_ref[...]
    else:
        h = fc1_relu()

    y = jnp.dot(h.astype(w2_ref.dtype), w2_ref[...],
                preferred_element_type=jnp.float32)
    o_ref[...] = (y + b2_ref[...].astype(jnp.float32)).astype(o_ref.dtype)


def merge_layer_forward(x1, x2, w1, b1, w2, b2, *, block_b=None,
                        split_fc1=None, n_tile=None):
    """MergeLayer forward.

    x1: (B, dim1), x2: (B, dim2); w1: (dim1+dim2, dim3), b1: (dim3,);
    w2: (dim3, dim4), b2: (dim4,). Returns (B, dim4).

    block_b:  optional cap on the batch tile (auto-sized from VMEM otherwise).
    split_fc1: None=auto (split fc1 weight when din > 256), or force True/False.
    n_tile:   None=auto (tile dim4 only if resident weights don't fit VMEM),
              or an explicit dim4 tile width (rounded to a lane multiple).
    """
    B, dim1 = x1.shape
    B2, dim2 = x2.shape
    assert B == B2, "x1 / x2 batch mismatch"
    din = dim1 + dim2
    dim3 = w1.shape[1]
    dim4 = w2.shape[1]
    assert w1.shape == (din, dim3) and b1.shape == (dim3,)
    assert w2.shape == (dim3, dim4) and b2.shape == (dim4,)

    x_itemsize = jnp.dtype(x1.dtype).itemsize
    w_itemsize = jnp.dtype(w1.dtype).itemsize

    # ---- lane-pad hidden / output feature dims (zero pad is exact) ----
    dim3_p = _round_up(dim3, _LANE)
    dim4_p = _round_up(dim4, _LANE)
    if dim3_p != dim3:
        w1 = jnp.pad(w1, ((0, 0), (0, dim3_p - dim3)))
        b1 = jnp.pad(b1, (0, dim3_p - dim3))
        w2 = jnp.pad(w2, ((0, dim3_p - dim3), (0, 0)))
    if dim4_p != dim4:
        w2 = jnp.pad(w2, ((0, 0), (0, dim4_p - dim4)))
        b2 = jnp.pad(b2, (0, dim4_p - dim4))
    b1_2d = b1.reshape(1, dim3_p)
    b2_2d = b2.reshape(1, dim4_p)

    # ---- fc1 strategy: fuse (pre-concat, one K=din dot) for small fan-in,
    #      split the weight (no HBM concat) for large fan-in ----
    if split_fc1 is None:
        split_fc1 = din > 256
    split_fc1 = bool(split_fc1)
    if split_fc1:
        x_in = (x1, x2)
        w1_in = (w1[:dim1, :], w1[dim1:, :])
    else:
        x_in = (jnp.concatenate([x1, x2], axis=1),)
        w1_in = (w1,)

    # ---- generation-aware VMEM budgeting ----
    vmem_budget = _vmem_budget_bytes()
    fc1_bytes = (din * dim3_p + dim3_p) * w_itemsize          # single-buffered
    fc2_bytes = (dim3_p * dim4_p + dim4_p) * w_itemsize       # single-buffered
    weight_budget = int(0.6 * vmem_budget)

    # ---- dim4 N-tiling fallback when resident weights would not fit ----
    if n_tile is not None:
        n_tiled = True
        tn = min(_round_up(int(n_tile), _LANE), dim4_p)
    else:
        n_tiled = fc1_bytes + fc2_bytes > weight_budget
        if n_tiled:
            tn_max = (weight_budget - fc1_bytes) // max(1, 2 * (dim3_p + 1) * w_itemsize)
            tn = max(_LANE, (tn_max // _LANE) * _LANE)
            tn = min(tn, dim4_p)
            # TODO(synk): if fc1 weights alone exceed the VMEM budget (huge
            # din*dim3), a dim3 K-tiling pass would also be needed.
        else:
            tn = dim4_p

    if n_tiled:
        num_n = max(1, math.ceil(dim4_p / tn))
        tn = _round_up(math.ceil(dim4_p / num_n), _LANE)      # balance dim4 tiles
        dim4_t = num_n * tn
        if dim4_t != dim4_p:
            w2 = jnp.pad(w2, ((0, 0), (0, dim4_t - dim4_p)))
            b2_2d = jnp.pad(b2_2d, ((0, 0), (0, dim4_t - dim4_p)))
        resident = fc1_bytes + 2 * (dim3_p * tn + tn) * w_itemsize
    else:
        num_n = 1
        dim4_t = dim4_p
        resident = fc1_bytes + fc2_bytes

    # ---- batch tile: fill leftover VMEM, balance tiles, >=2 tiles if possible ----
    per_row = (2 * (din + tn) * x_itemsize                    # x in / y out (dbl-buffered)
               + (dim3_p + tn) * 4                            # f32 intermediates
               + (dim3_p * 4 if n_tiled else 0))              # hidden scratch
    tb_cap = max(_SUBLANE, (vmem_budget - resident) // max(1, per_row))
    tb_cap = min(tb_cap, 1024 if block_b is None else max(_SUBLANE, int(block_b)))
    tb_cap = max(_SUBLANE, (tb_cap // _SUBLANE) * _SUBLANE)

    num_b = max(1, math.ceil(B / tb_cap))
    if num_b < 2 and B >= 2 * _SUBLANE:
        num_b = 2      # both v7x TensorCores get work on the "parallel" axis
    tb = _round_up(math.ceil(B / num_b), _SUBLANE)
    B_p = num_b * tb
    if B_p != B:
        x_in = tuple(jnp.pad(x, ((0, B_p - B), (0, 0))) for x in x_in)

    # ---- specs ----
    fc1_kw = dict(pipeline_mode=pl.Buffered(1))               # constant index_map
    if n_tiled:
        grid = (num_b, num_n)
        batch_map = lambda i, j: (i, 0)
        const_map = lambda i, j: (0, 0)
        ncol_map = lambda i, j: (0, j)
        out_map = lambda i, j: (i, j)
        dim_sems = ("parallel", "arbitrary")
        fc2_kw = {}                                           # changes with j: double-buffer
        scratch_shapes = [pltpu.VMEM((tb, dim3_p), jnp.float32)]
    else:
        grid = (num_b,)
        batch_map = lambda i: (i, 0)
        const_map = lambda i: (0, 0)
        ncol_map = const_map
        out_map = batch_map
        dim_sems = ("parallel",)
        fc2_kw = dict(pipeline_mode=pl.Buffered(1))           # resident too
        scratch_shapes = []

    in_specs = []
    if split_fc1:
        in_specs += [
            pl.BlockSpec((tb, dim1), batch_map),
            pl.BlockSpec((tb, dim2), batch_map),
            pl.BlockSpec((dim1, dim3_p), const_map, **fc1_kw),
            pl.BlockSpec((dim2, dim3_p), const_map, **fc1_kw),
        ]
    else:
        in_specs += [
            pl.BlockSpec((tb, din), batch_map),
            pl.BlockSpec((din, dim3_p), const_map, **fc1_kw),
        ]
    in_specs += [
        pl.BlockSpec((1, dim3_p), const_map, **fc1_kw),       # b1
        pl.BlockSpec((dim3_p, tn), ncol_map, **fc2_kw),       # w2
        pl.BlockSpec((1, tn), ncol_map, **fc2_kw),            # b2
    ]
    out_specs = pl.BlockSpec((tb, tn), out_map)

    flops = 2 * B_p * (din * dim3_p + dim3_p * dim4_t)
    bytes_accessed = (
        B_p * (din + dim4_t) * x_itemsize
        + (din * dim3_p + dim3_p * dim4_t + dim3_p + dim4_t) * w_itemsize)

    kernel = functools.partial(_merge_kernel, split_fc1=split_fc1, n_tiled=n_tiled)

    out = pl.pallas_call(
        kernel,
        out_shape=jax.ShapeDtypeStruct((B_p, dim4_t), x1.dtype),
        grid=grid,
        in_specs=in_specs,
        out_specs=out_specs,
        scratch_shapes=scratch_shapes,
        compiler_params=pltpu.CompilerParams(
            dimension_semantics=dim_sems,
            vmem_limit_bytes=int(vmem_budget)),
        cost_estimate=pl.CostEstimate(
            flops=flops, transcendentals=0, bytes_accessed=bytes_accessed),
    )(*x_in, *w1_in, b1_2d, w2, b2_2d)

    return out[:B, :dim4]


def init_merge_layer_params(key, dim1, dim2, dim3, dim4, dtype=jnp.float32):
    """Mirrors MergeLayer.__init__: xavier_normal_ weights, PyTorch-default biases.
    Weights are returned already transposed to (in, out)."""
    k1, k2, k3, k4 = jax.random.split(key, 4)
    fan_in1, fan_out1 = dim1 + dim2, dim3
    fan_in2, fan_out2 = dim3, dim4
    std1 = float(np.sqrt(2.0 / (fan_in1 + fan_out1)))
    std2 = float(np.sqrt(2.0 / (fan_in2 + fan_out2)))
    w1 = jax.random.normal(k1, (fan_in1, fan_out1), dtype) * std1
    w2 = jax.random.normal(k2, (fan_in2, fan_out2), dtype) * std2
    bb1 = 1.0 / np.sqrt(fan_in1)
    bb2 = 1.0 / np.sqrt(fan_in2)
    b1 = jax.random.uniform(k3, (dim3,), dtype, minval=-bb1, maxval=bb1)
    b2 = jax.random.uniform(k4, (dim4,), dtype, minval=-bb2, maxval=bb2)
    return w1, b1, w2, b2


def _numpy_reference(x1, x2, w1, b1, w2, b2):
    xn = np.concatenate([np.asarray(x1), np.asarray(x2)], axis=1).astype(np.float64)
    h = np.maximum(xn @ np.asarray(w1, np.float64) + np.asarray(b1, np.float64), 0.0)
    return h @ np.asarray(w2, np.float64) + np.asarray(b2, np.float64)


if __name__ == "__main__":
    key = jax.random.PRNGKey(0)

    # Small shapes consistent with MergeLayer; the three cases exercise the
    # fused-fc1 path, the split-fc1 path, and the dim4 N-tiled path.
    cases = [
        dict(name="fused", B=40, dim1=16, dim2=16, dim3=64, dim4=32,
             kw=dict(block_b=16)),
        dict(name="split", B=24, dim1=16, dim2=16, dim3=64, dim4=32,
             kw=dict(split_fc1=True)),
        dict(name="ntile", B=32, dim1=16, dim2=16, dim3=64, dim4=256,
             kw=dict(n_tile=128)),
    ]

    for idx, c in enumerate(cases):
        kcase = jax.random.fold_in(key, idx)
        kp, kx1, kx2 = jax.random.split(kcase, 3)
        w1, b1, w2, b2 = init_merge_layer_params(
            kp, c["dim1"], c["dim2"], c["dim3"], c["dim4"])
        x1 = jax.random.normal(kx1, (c["B"], c["dim1"]), jnp.float32)
        x2 = jax.random.normal(kx2, (c["B"], c["dim2"]), jnp.float32)

        fwd = jax.jit(functools.partial(merge_layer_forward, **c["kw"]))
        out = fwd(x1, x2, w1, b1, w2, b2)
        jax.block_until_ready(out)

        ref = _numpy_reference(x1, x2, w1, b1, w2, b2)
        np.testing.assert_allclose(np.asarray(out), ref, rtol=1e-4, atol=1e-4,
                                   err_msg=f"case {c['name']} mismatch")

    print("KERNEL_OK")
</pallas_src>

<mosaic_0001>
module attributes {stable_mosaic.version = 11 : i64} {
  func.func @_merge_kernel(%arg0: i32, %arg1: memref<16x32xf32, #tpu.memory_space<vmem>>, %arg2: memref<32x128xf32, #tpu.memory_space<vmem>>, %arg3: memref<1x128xf32, #tpu.memory_space<vmem>>, %arg4: memref<128x128xf32, #tpu.memory_space<vmem>>, %arg5: memref<1x128xf32, #tpu.memory_space<vmem>>, %arg6: memref<16x128xf32, #tpu.memory_space<vmem>>) attributes {dimension_semantics = [#tpu.dimension_semantics<parallel>], iteration_bounds = array<i64: 3>, scalar_prefetch = 0 : i64, scratch_operands = 0 : i64, tpu.core_type = #tpu.core_type<tc>, window_params = [{transform_indices = @transform_0, window_bounds = array<i64: 16, 32>}, {pipeline_mode = #tpu.pipeline_mode<synchronous>, transform_indices = @transform_1, window_bounds = array<i64: 32, 128>}, {pipeline_mode = #tpu.pipeline_mode<synchronous>, transform_indices = @transform_2, window_bounds = array<i64: 1, 128>}, {pipeline_mode = #tpu.pipeline_mode<synchronous>, transform_indices = @transform_3, window_bounds = array<i64: 128, 128>}, {pipeline_mode = #tpu.pipeline_mode<synchronous>, transform_indices = @transform_4, window_bounds = array<i64: 1, 128>}, {transform_indices = @transform_5, window_bounds = array<i64: 16, 128>}]} {
    %c0 = arith.constant 0 : index
    %c0_0 = arith.constant 0 : index
    %0 = vector.load %arg1[%c0, %c0_0] : memref<16x32xf32, #tpu.memory_space<vmem>>, vector<16x32xf32>
    %c0_1 = arith.constant 0 : index
    %c0_2 = arith.constant 0 : index
    %1 = vector.load %arg2[%c0_1, %c0_2] : memref<32x128xf32, #tpu.memory_space<vmem>>, vector<32x128xf32>
    %cst = arith.constant dense<0.000000e+00> : vector<16x128xf32>
    %2 = tpu.matmul %0, %1, %cst {dimension_numbers = #tpu.dot_dimension_numbers<[1], [0], [0], [1], [0, 0, 1, 1], [], []>} : vector<16x32xf32>, vector<32x128xf32>, vector<16x128xf32> -> vector<16x128xf32>
    %c0_3 = arith.constant 0 : index
    %c0_4 = arith.constant 0 : index
    %3 = vector.load %arg3[%c0_3, %c0_4] : memref<1x128xf32, #tpu.memory_space<vmem>>, vector<1x128xf32>
    %4 = vector.broadcast %3 : vector<1x128xf32> to vector<16x128xf32>
    %5 = arith.addf %2, %4 : vector<16x128xf32>
    %cst_5 = arith.constant 0.000000e+00 : f32
    %6 = vector.broadcast %cst_5 : f32 to vector<16x128xf32>
    %7 = arith.maximumf %5, %6 : vector<16x128xf32>
    %c0_6 = arith.constant 0 : index
    %c0_7 = arith.constant 0 : index
    %8 = vector.load %arg4[%c0_6, %c0_7] : memref<128x128xf32, #tpu.memory_space<vmem>>, vector<128x128xf32>
    %cst_8 = arith.constant dense<0.000000e+00> : vector<16x128xf32>
    %9 = tpu.matmul %7, %8, %cst_8 {dimension_numbers = #tpu.dot_dimension_numbers<[1], [0], [0], [1], [0, 0, 1, 1], [], []>} : vector<16x128xf32>, vector<128x128xf32>, vector<16x128xf32> -> vector<16x128xf32>
    %c0_9 = arith.constant 0 : index
    %c0_10 = arith.constant 0 : index
    %10 = vector.load %arg5[%c0_9, %c0_10] : memref<1x128xf32, #tpu.memory_space<vmem>>, vector<1x128xf32>
    %11 = vector.broadcast %10 : vector<1x128xf32> to vector<16x128xf32>
    %12 = arith.addf %9, %11 : vector<16x128xf32>
    %c0_11 = arith.constant 0 : index
    %c0_12 = arith.constant 0 : index
    %13 = vector.load %arg6[%c0_11, %c0_12] : memref<16x128xf32, #tpu.memory_space<vmem>>, vector<16x128xf32>
    tpu.vector_store %arg6[%c0_11, %c0_12], %12 {strides = array<i32>} : memref<16x128xf32, #tpu.memory_space<vmem>>, vector<16x128xf32>,
    return
  }
  func.func @transform_0(%arg0: i32) -> (i32, i32) {
    %c0_i32 = arith.constant 0 : i32
    %c0_i32_0 = arith.constant 0 : i32
    return %arg0, %c0_i32 : i32, i32
  }
  func.func @transform_1(%arg0: i32) -> (i32, i32) {
    %c0_i32 = arith.constant 0 : i32
    %c0_i32_0 = arith.constant 0 : i32
    %c0_i32_1 = arith.constant 0 : i32
    return %c0_i32, %c0_i32_0 : i32, i32
  }
  func.func @transform_2(%arg0: i32) -> (i32, i32) {
    %c0_i32 = arith.constant 0 : i32
    %c0_i32_0 = arith.constant 0 : i32
    %c0_i32_1 = arith.constant 0 : i32
    return %c0_i32, %c0_i32_0 : i32, i32
  }
  func.func @transform_3(%arg0: i32) -> (i32, i32) {
    %c0_i32 = arith.constant 0 : i32
    %c0_i32_0 = arith.constant 0 : i32
    %c0_i32_1 = arith.constant 0 : i32
    return %c0_i32, %c0_i32_0 : i32, i32
  }
  func.func @transform_4(%arg0: i32) -> (i32, i32) {
    %c0_i32 = arith.constant 0 : i32
    %c0_i32_0 = arith.constant 0 : i32
    %c0_i32_1 = arith.constant 0 : i32
    return %c0_i32, %c0_i32_0 : i32, i32
  }
  func.func @transform_5(%arg0: i32) -> (i32, i32) {
    %c0_i32 = arith.constant 0 : i32
    %c0_i32_0 = arith.constant 0 : i32
    return %arg0, %c0_i32 : i32, i32
  }
}

</mosaic_0001>

<llo_original>
// kernel: merge_layer_forward.1
$region0: #{merge_layer_forward.1}
  #allocation0 [shape = 'u32[]', space=smem, size = 0x4, offset = 0x4, fixed_abs, tag = 'smem constant byte address 0x4 - core index']
  #allocation1 [shape = 'u32[144,128]{1,0:T(1,128)}', space=vmem, size = 0x12000, scoped, tag = 'internal scratch']
  %s0 = inlined_call_operand.vmem [shape: f32[48,32], index: 0, kind: input, shape index: {}]
  %s1 = inlined_call_operand.vmem [shape: f32[32,128], index: 1, kind: input, shape index: {}]
  %s2 = inlined_call_operand.vmem [shape: f32[1,128], index: 2, kind: input, shape index: {}]
  %s3 = inlined_call_operand.vmem [shape: f32[128,128], index: 3, kind: input, shape index: {}]
  %s4 = inlined_call_operand.vmem [shape: f32[1,128], index: 4, kind: input, shape index: {}]
  %s5 = inlined_call_operand.vmem [shape: f32[48,128], index: 5, kind: output, shape index: {}]
  %s6 = sld [smem:[#allocation0]]
  $region53: #{merge_layer_forward.1} parent=0
    _
  %s8 = ssub.s32 1, %s6
  %s9 = scalar_select 0, %s8, %s6
  loop: start=0, step=1, limit=5
  $region2: #{merge_layer_forward.1} parent=0 // loop_pre_header
    _
  $region3: #{merge_layer_forward.1} parent=0 // loop_header
    %s11 = sphi 0, %s15
    %p12 = scmp.ge.s32.totalorder %s11, 5
    %s21 = sphi 0, %s23
    %s24 = sphi 0, %s21
    %s25 = sphi 0, %s24
    %s41 = sphi 0, %s25
    %s45 = sphi 0, %s45
    %s47 = sphi 0, %s45
    %s48 = sphi 0, %s47
    %s62 = sphi 0, %s48
    %s66 = sphi 0, %s66
    %s68 = sphi 0, %s66
    %s69 = sphi 0, %s68
    %s83 = sphi 0, %s69
    %s87 = sphi 0, %s87
    %s89 = sphi 0, %s87
    %s90 = sphi 0, %s89
    %s104 = sphi 0, %s90
    %s108 = sphi 0, %s108
    %s110 = sphi 0, %s108
    %s111 = sphi 0, %s110
    %s125 = sphi 0, %s111
    %s131 = sphi 0, %s133
    %s134 = sphi 0, %s131
    %s135 = sphi 0, %s134
    %s151 = sphi 0, %s135
  $region4: #{merge_layer_forward.1} parent=0 // loop_header_branch
    %14 = sbr.rel (%p12) target = $region8
  $region5: #{merge_layer_forward.1} parent=0 // loop_body
    %s16 = ssub.s32 %s11, 1
    %s17 = ssub.s32 %s11, 2
    %s18 = sadd.s32 %s11, 1
    %s19 = ssub.s32 %s11, %s18
    %p20 = scmp.eq.s32.totalorder %s19, 0
    %s22 = sadd.s32 %s21, 1
    %s23 = scalar_select %p20, %s21, %s22
    %p26 = pneg %p20
    %p27 = scmp.eq.s32.totalorder %s11, 2
    %p28 = por %p26, %p27
    %p29 = scmp.ne.s32.totalorder %s21, %s24
    %p30 = scmp.eq.s32.totalorder %s11, 0
    %p31 = por %p29, %p30
    %p32 = scmp.ne.s32.totalorder %s21, %s24
    %p33 = scmp.eq.s32.totalorder %s16, 2
    %p34 = por %p32, %p33
    %p35 = scmp.ne.s32.totalorder %s24, %s25
    %p36 = scmp.eq.s32.totalorder %s16, 0
    %p37 = por %p35, %p36
    %p38 = scmp.ne.s32.totalorder %s24, %s25
    %p39 = scmp.eq.s32.totalorder %s17, 2
    %p40 = por %p38, %p39
    %p42 = scmp.ne.s32.totalorder %s25, %s41
    %p43 = scmp.eq.s32.totalorder %s17, 0
    %p44 = por %p42, %p43
    %s46 = sadd.s32 %s45, 1
    %p49 = scmp.eq.s32.totalorder %s11, 2
    %p50 = scmp.ne.s32.totalorder %s45, %s47
    %p51 = scmp.eq.s32.totalorder %s11, 0
    %p52 = por %p50, %p51
    %p53 = scmp.ne.s32.totalorder %s45, %s47
    %p54 = scmp.eq.s32.totalorder %s16, 2
    %p55 = por %p53, %p54
    %p56 = scmp.ne.s32.totalorder %s47, %s48
    %p57 = scmp.eq.s32.totalorder %s16, 0
    %p58 = por %p56, %p57
    %p59 = scmp.ne.s32.totalorder %s47, %s48
    %p60 = scmp.eq.s32.totalorder %s17, 2
    %p61 = por %p59, %p60
    %p63 = scmp.ne.s32.totalorder %s48, %s62
    %p64 = scmp.eq.s32.totalorder %s17, 0
    %p65 = por %p63, %p64
    %s67 = sadd.s32 %s66, 1
    %p70 = scmp.eq.s32.totalorder %s11, 2
    %p71 = scmp.ne.s32.totalorder %s66, %s68
    %p72 = scmp.eq.s32.totalorder %s11, 0
    %p73 = por %p71, %p72
    %p74 = scmp.ne.s32.totalorder %s66, %s68
    %p75 = scmp.eq.s32.totalorder %s16, 2
    %p76 = por %p74, %p75
    %p77 = scmp.ne.s32.totalorder %s68, %s69
    %p78 = scmp.eq.s32.totalorder %s16, 0
    %p79 = por %p77, %p78
    %p80 = scmp.ne.s32.totalorder %s68, %s69
    %p81 = scmp.eq.s32.totalorder %s17, 2
    %p82 = por %p80, %p81
    %p84 = scmp.ne.s32.totalorder %s69, %s83
    %p85 = scmp.eq.s32.totalorder %s17, 0
    %p86 = por %p84, %p85
    %s88 = sadd.s32 %s87, 1
    %p91 = scmp.eq.s32.totalorder %s11, 2
    %p92 = scmp.ne.s32.totalorder %s87, %s89
    %p93 = scmp.eq.s32.totalorder %s11, 0
    %p94 = por %p92, %p93
    %p95 = scmp.ne.s32.totalorder %s87, %s89
    %p96 = scmp.eq.s32.totalorder %s16, 2
    %p97 = por %p95, %p96
    %p98 = scmp.ne.s32.totalorder %s89, %s90
    %p99 = scmp.eq.s32.totalorder %s16, 0
    %p100 = por %p98, %p99
    %p101 = scmp.ne.s32.totalorder %s89, %s90
    %p102 = scmp.eq.s32.totalorder %s17, 2
    %p103 = por %p101, %p102
    %p105 = scmp.ne.s32.totalorder %s90, %s104
    %p106 = scmp.eq.s32.totalorder %s17, 0
    %p107 = por %p105, %p106
    %s109 = sadd.s32 %s108, 1
    %p112 = scmp.eq.s32.totalorder %s11, 2
    %p113 = scmp.ne.s32.totalorder %s108, %s110
    %p114 = scmp.eq.s32.totalorder %s11, 0
    %p115 = por %p113, %p114
    %p116 = scmp.ne.s32.totalorder %s108, %s110
    %p117 = scmp.eq.s32.totalorder %s16, 2
    %p118 = por %p116, %p117
    %p119 = scmp.ne.s32.totalorder %s110, %s111
    %p120 = scmp.eq.s32.totalorder %s16, 0
    %p121 = por %p119, %p120
    %p122 = scmp.ne.s32.totalorder %s110, %s111
    %p123 = scmp.eq.s32.totalorder %s17, 2
    %p124 = por %p122, %p123
    %p126 = scmp.ne.s32.totalorder %s111, %s125
    %p127 = scmp.eq.s32.totalorder %s17, 0
    %p128 = por %p126, %p127
    %s129 = ssub.s32 %s11, %s18
    %p130 = scmp.eq.s32.totalorder %s129, 0
    %s132 = sadd.s32 %s131, 1
    %s133 = scalar_select %p130, %s131, %s132
    %p136 = pneg %p130
    %p137 = scmp.eq.s32.totalorder %s11, 2
    %p138 = por %p136, %p137
    %p139 = scmp.ne.s32.totalorder %s131, %s134
    %p140 = scmp.eq.s32.totalorder %s11, 0
    %p141 = por %p139, %p140
    %p142 = scmp.ne.s32.totalorder %s131, %s134
    %p143 = scmp.eq.s32.totalorder %s16, 2
    %p144 = por %p142, %p143
    %p145 = scmp.ne.s32.totalorder %s134, %s135
    %p146 = scmp.eq.s32.totalorder %s16, 0
    %p147 = por %p145, %p146
    %p148 = scmp.ne.s32.totalorder %s134, %s135
    %p149 = scmp.eq.s32.totalorder %s17, 2
    %p150 = por %p148, %p149
    %p152 = scmp.ne.s32.totalorder %s135, %s151
    %p153 = scmp.eq.s32.totalorder %s17, 0
    %p154 = por %p152, %p153
    %p155 = scmp.le.s32.totalorder 1, %s11
    %p156 = scmp.lt.s32.totalorder %s11, 4
    %p157 = pnand %p155, %p156
    %p158 = pneg %p157
    // Predicated region
    $region9: #{merge_layer_forward.1} parent=5 // pred_check
      _
    $region10: #{merge_layer_forward.1} parent=5 // pred_check_branch
      %160 = sbr.rel (%p157) target = $region12
    $region11: #{merge_layer_forward.1} parent=5 // pred_region
      %s161 = ssub.s32 %s11, 1
      // Predicated region
      $region13: #{merge_layer_forward.1} parent=11 // pred_check
        %p162 = pneg %p58
      $region14: #{merge_layer_forward.1} parent=11 // pred_check_branch
        %164 = sbr.rel (%p162) target = $region16
      $region15: #{merge_layer_forward.1} parent=11 // pred_region
        _
      $region16: #{merge_layer_forward.1} parent=11 // pred_fallthru
        _
      // Predicated region
      $region17: #{merge_layer_forward.1} parent=11 // pred_check
        %p165 = pneg %p79
      $region18: #{merge_layer_forward.1} parent=11 // pred_check_branch
        %167 = sbr.rel (%p165) target = $region20
      $region19: #{merge_layer_forward.1} parent=11 // pred_region
        _
      $region20: #{merge_layer_forward.1} parent=11 // pred_fallthru
        _
      // Predicated region
      $region21: #{merge_layer_forward.1} parent=11 // pred_check
        %p168 = pneg %p100
      $region22: #{merge_layer_forward.1} parent=11 // pred_check_branch
        %170 = sbr.rel (%p168) target = $region24
      $region23: #{merge_layer_forward.1} parent=11 // pred_region
        _
      $region24: #{merge_layer_forward.1} parent=11 // pred_fallthru
        _
      // Predicated region
      $region25: #{merge_layer_forward.1} parent=11 // pred_check
        %p171 = pneg %p121
      $region26: #{merge_layer_forward.1} parent=11 // pred_check_branch
        %173 = sbr.rel (%p171) target = $region28
      $region27: #{merge_layer_forward.1} parent=11 // pred_region
        _
      $region28: #{merge_layer_forward.1} parent=11 // pred_fallthru
        _
    $region12: #{merge_layer_forward.1} parent=5 // pred_fallthru
      _
    %p174 = scmp.lt.s32.totalorder %s11, 3
    // Predicated region
    $region29: #{merge_layer_forward.1} parent=5 // pred_check
      %p175 = pneg %p174
    $region30: #{merge_layer_forward.1} parent=5 // pred_check_branch
      %177 = sbr.rel (%p175) target = $region32
    $region31: #{merge_layer_forward.1} parent=5 // pred_region
      // Predicated region
      $region33: #{merge_layer_forward.1} parent=31 // pred_check
        %p178 = pneg %p31
      $region34: #{merge_layer_forward.1} parent=31 // pred_check_branch
        %180 = sbr.rel (%p178) target = $region36
      $region35: #{merge_layer_forward.1} parent=31 // pred_region
        %s181 = smul.u32 2, %s11
        %p182 = scmp.lt.s32.totalorder %s181, 5
        %s183 = scalar_select %p182, %s181, 5
        %s184 = smul.addr %s183, 8
        %s185 = scalar_lea.vmem %s0, %s184
        %s186 = smul.u32 2, %s11
      $region36: #{merge_layer_forward.1} parent=31 // pred_fallthru
        _
    $region32: #{merge_layer_forward.1} parent=5 // pred_fallthru
      _
    %p187 = scmp.le.s32.totalorder 1, %s11
    %p188 = scmp.lt.s32.totalorder %s11, 4
    %p189 = pnand %p187, %p188
    %p190 = pneg %p189
    // Predicated region
    $region37: #{merge_layer_forward.1} parent=5 // pred_check
      _
    $region38: #{merge_layer_forward.1} parent=5 // pred_check_branch
      %192 = sbr.rel (%p189) target = $region40
    $region39: #{merge_layer_forward.1} parent=5 // pred_region
      %s193 = ssub.s32 %s11, 1
      %s194 = smul.u32 2, %s16
      %p195 = scmp.lt.s32.totalorder %s194, 5
      %s196 = scalar_select %p195, %s194, 5
      %s197 = smul.addr %s196, 8
      %s198 = scalar_lea.vmem %s0, %s197
      %p199 = pneg %p37
      %p200 = pneg %p34
      %p201 = pneg %p58
      %p202 = pneg %p55
      %p203 = pneg %p79
      %p204 = pneg %p76
      %p205 = pneg %p100
      %p206 = pneg %p97
      %p207 = pneg %p121
      %p208 = pneg %p118
      %p209 = pneg %p147
      %p210 = pneg %p144
      %s211 = smul.u32 2, %s16
      %p212 = scmp.lt.s32.totalorder %s211, 5
      %s213 = scalar_select %p212, %s211, 5
      %s214 = smul.addr %s213, 8
      %s215 = scalar_lea.vmem %s5, %s214
      %s216 = smul.u32 2, %s16
      %p217 = scmp.lt.s32.totalorder %s216, 5
      %s218 = scalar_select %p217, %s216, 5
      %s219 = smul.addr %s218, 8
      %s220 = scalar_lea.vmem %s0, %s219
      %s221 = smul.u32 2, %s16
      %s222 = smul.u32 2, %s16
      %p223 = scmp.lt.s32.totalorder %s222, 5
      %s224 = scalar_select %p223, %s222, 5
      %s225 = smul.addr %s224, 8
      %s226 = scalar_lea.vmem %s5, %s225
      %s227 = smul.u32 2, %s16
      %v228 = vld [vmem:[%s220] sm:$0xff]
      %v229 = vld [vmem:[%s220 + $0x8] sm:$0xff]
      %v230 = vld [vmem:[%s1] sm:$0xff]
      %v231 = vld [vmem:[%s1 + $0x8] sm:$0xff]
      %v232 = vld [vmem:[%s1 + $0x10] sm:$0xff]
      %v233 = vld [vmem:[%s1 + $0x18] sm:$0xff]
      %v234 = vld [vmem:[%s2] sm:$0x1]
      %v236 = vlaneseq
      %v237 = vshrl.u32 %v236, 7
      %v238 = vsub.s32 0, %v237
      %v239 = vrot.slane %v234, %v238
      %vm241 = vcmask 261120
      %v243 = vsel %vm241, %v228, 0
      %v246 = vsel %vm241, %v229, 0
      %248 = vmatprep.subr.mxu0 0.0
      %249 = vmatpush1.msra.mxu0 %v230
      %250 = vmatprep.subr.mxu0 0.0
      %251 = vmatpush1.msra.mxu0 %v231
      %252 = vmatprep.subr.mxu0 0.0
      %253 = vmatpush1.msra.mxu0 %v232
      %254 = vmatprep.subr.mxu0 0.0
      %255 = vmatpush1.msra.mxu0 %v233
      %256 = vmatprep.subr.mxu0 0.0
      %257 = vmatpush1.msra.mxu0 0.0
      %258 = vmatprep.subr.mxu0 0.0
      %259 = vmatpush1.msra.mxu0 0.0
      %260 = vmatprep.subr.mxu0 0.0
      %261 = vmatpush1.msra.mxu0 0.0
      %262 = vmatprep.subr.mxu0 0.0
      %263 = vmatpush1.msra.mxu0 0.0
      %264 = vmatprep.subr.mxu0 0.0
      %265 = vmatpush1.msra.mxu0 0.0
      %266 = vmatprep.subr.mxu0 0.0
      %267 = vmatpush1.msra.mxu0 0.0
      %268 = vmatprep.subr.mxu0 0.0
      %269 = vmatpush1.msra.mxu0 0.0
      %270 = vmatprep.subr.mxu0 0.0
      %271 = vmatpush1.msra.mxu0 0.0
      %272 = vmatprep.subr.mxu0 0.0
      %273 = vmatpush1.msra.mxu0 0.0
      %274 = vmatprep.subr.mxu0 0.0
      %275 = vmatpush1.msra.mxu0 0.0
      %276 = vmatprep.subr.mxu0 0.0
      %277 = vmatpush1.msra.mxu0 0.0
      %278 = vmatprep.subr.mxu0 0.0
      %279 = vmatpush1.msra.mxu0 0.0
      %280 = vmatprep.subr.mxu0 0.0
      %281 = vmatpush1.msra.mxu0 0.0
      %282 = vmatprep.subr.mxu0 0.0
      %283 = vmatpush1.msra.mxu0 0.0
      %284 = vmatprep.subr.mxu0 0.0
      %285 = vmatpush1.msra.mxu0 0.0
      %286 = vmatprep.subr.mxu0 0.0
      %287 = vmatpush1.msra.mxu0 0.0
      %288 = vmatprep.subr.mxu0 0.0
      %289 = vmatpush1.msra.mxu0 0.0
      %290 = vmatprep.subr.mxu0 0.0
      %291 = vmatpush1.msra.mxu0 0.0
      %292 = vmatprep.subr.mxu0 0.0
      %293 = vmatpush1.msra.mxu0 0.0
      %294 = vmatprep.subr.mxu0 0.0
      %295 = vmatpush1.msra.mxu0 0.0
      %296 = vmatprep.subr.mxu0 0.0
      %297 = vmatpush1.msra.mxu0 0.0
      %298 = vmatprep.subr.mxu0 0.0
      %299 = vmatpush1.msra.mxu0 0.0
      %300 = vmatprep.subr.mxu0 0.0
      %301 = vmatpush1.msra.mxu0 0.0
      %302 = vmatprep.subr.mxu0 0.0
      %303 = vmatpush1.msra.mxu0 0.0
      %304 = vmatprep.subr.mxu0 0.0
      %305 = vmatpush1.msra.mxu0 0.0
      %306 = vmatprep.subr.mxu0 0.0
      %307 = vmatpush1.msra.mxu0 0.0
      %308 = vmatprep.subr.mxu0 0.0
      %309 = vmatpush1.msra.mxu0 0.0
      %310 = vmatprep.subr.mxu0 0.0
      %311 = vmatpush1.msra.mxu0 0.0
      %312 = vmatprep.mubr.f32.mxu0 0.0
      %313 = vmatmul.mubr.f32.gmra.mrb[0].mxu0 %v243
      %v314 = vpop.f32.mrb[0].mxu0
      %v315 = vadd.f32 %v239, %v314
      %v316 = vpop.f32.mrb[0].mxu0
      %317 = vmatprep.mubr.f32.mxu0 0.0
      %318 = vmatmul.mubr.f32.gmra.mrb[0].mxu0 %v246
      %v319 = vpop.f32.mrb[0].mxu0
      %v320 = vadd.f32 %v239, %v319
      %v321 = vpop.f32.mrb[0].mxu0
      %322 = vdwg.mxu0
      %v323 = vmax.f32 %v315, 0.0
      %v324 = vmax.f32 %v320, 0.0
      %v325 = vld [vmem:[%s3] sm:$0xff]
      %v326 = vld [vmem:[%s3 + $0x8] sm:$0xff]
      %v327 = vld [vmem:[%s3 + $0x10] sm:$0xff]
      %v328 = vld [vmem:[%s3 + $0x18] sm:$0xff]
      %v329 = vld [vmem:[%s3 + $0x20] sm:$0xff]
      %v330 = vld [vmem:[%s3 + $0x28] sm:$0xff]
      %v331 = vld [vmem:[%s3 + $0x30] sm:$0xff]
      %v332 = vld [vmem:[%s3 + $0x38] sm:$0xff]
      %v333 = vld [vmem:[%s3 + $0x40] sm:$0xff]
      %v334 = vld [vmem:[%s3 + $0x48] sm:$0xff]
      %v335 = vld [vmem:[%s3 + $0x50] sm:$0xff]
      %v336 = vld [vmem:[%s3 + $0x58] sm:$0xff]
      %v337 = vld [vmem:[%s3 + $0x60] sm:$0xff]
      %v338 = vld [vmem:[%s3 + $0x68] sm:$0xff]
      %v339 = vld [vmem:[%s3 + $0x70] sm:$0xff]
      %v340 = vld [vmem:[%s3 + $0x78] sm:$0xff]
      %v341 = vld [vmem:[%s4] sm:$0x1]
      %v343 = vlaneseq
      %v344 = vshrl.u32 %v343, 7
      %v345 = vsub.s32 0, %v344
      %v346 = vrot.slane %v341, %v345
      %348 = vmatprep.subr.mxu0 0.0
      %349 = vmatpush1.msra.mxu0 %v325
      %350 = vmatprep.subr.mxu0 0.0
      %351 = vmatpush1.msra.mxu0 %v326
      %352 = vmatprep.subr.mxu0 0.0
      %353 = vmatpush1.msra.mxu0 %v327
      %354 = vmatprep.subr.mxu0 0.0
      %355 = vmatpush1.msra.mxu0 %v328
      %356 = vmatprep.subr.mxu0 0.0
      %357 = vmatpush1.msra.mxu0 %v329
      %358 = vmatprep.subr.mxu0 0.0
      %359 = vmatpush1.msra.mxu0 %v330
      %360 = vmatprep.subr.mxu0 0.0
      %361 = vmatpush1.msra.mxu0 %v331
      %362 = vmatprep.subr.mxu0 0.0
      %363 = vmatpush1.msra.mxu0 %v332
      %364 = vmatprep.subr.mxu0 0.0
      %365 = vmatpush1.msra.mxu0 %v333
      %366 = vmatprep.subr.mxu0 0.0
      %367 = vmatpush1.msra.mxu0 %v334
      %368 = vmatprep.subr.mxu0 0.0
      %369 = vmatpush1.msra.mxu0 %v335
      %370 = vmatprep.subr.mxu0 0.0
      %371 = vmatpush1.msra.mxu0 %v336
      %372 = vmatprep.subr.mxu0 0.0
      %373 = vmatpush1.msra.mxu0 %v337
      %374 = vmatprep.subr.mxu0 0.0
      %375 = vmatpush1.msra.mxu0 %v338
      %376 = vmatprep.subr.mxu0 0.0
      %377 = vmatpush1.msra.mxu0 %v339
      %378 = vmatprep.subr.mxu0 0.0
      %379 = vmatpush1.msra.mxu0 %v340
      %380 = vmatprep.subr.mxu0 0.0
      %381 = vmatpush1.msra.mxu0 0.0
      %382 = vmatprep.subr.mxu0 0.0
      %383 = vmatpush1.msra.mxu0 0.0
      %384 = vmatprep.subr.mxu0 0.0
      %385 = vmatpush1.msra.mxu0 0.0
      %386 = vmatprep.subr.mxu0 0.0
      %387 = vmatpush1.msra.mxu0 0.0
      %388 = vmatprep.subr.mxu0 0.0
      %389 = vmatpush1.msra.mxu0 0.0
      %390 = vmatprep.subr.mxu0 0.0
      %391 = vmatpush1.msra.mxu0 0.0
      %392 = vmatprep.subr.mxu0 0.0
      %393 = vmatpush1.msra.mxu0 0.0
      %394 = vmatprep.subr.mxu0 0.0
      %395 = vmatpush1.msra.mxu0 0.0
      %396 = vmatprep.subr.mxu0 0.0
      %397 = vmatpush1.msra.mxu0 0.0
      %398 = vmatprep.subr.mxu0 0.0
      %399 = vmatpush1.msra.mxu0 0.0
      %400 = vmatprep.subr.mxu0 0.0
      %401 = vmatpush1.msra.mxu0 0.0
      %402 = vmatprep.subr.mxu0 0.0
      %403 = vmatpush1.msra.mxu0 0.0
      %404 = vmatprep.subr.mxu0 0.0
      %405 = vmatpush1.msra.mxu0 0.0
      %406 = vmatprep.subr.mxu0 0.0
      %407 = vmatpush1.msra.mxu0 0.0
      %408 = vmatprep.subr.mxu0 0.0
      %409 = vmatpush1.msra.mxu0 0.0
      %410 = vmatprep.subr.mxu0 0.0
      %411 = vmatpush1.msra.mxu0 0.0
      %412 = vmatprep.mubr.f32.mxu0 0.0
      %413 = vmatmul.mubr.f32.gmra.mrb[0].mxu0 %v323
      %v414 = vpop.f32.mrb[0].mxu0
      %v415 = vadd.f32 %v346, %v414
      %v416 = vpop.f32.mrb[0].mxu0
      %417 = vmatprep.mubr.f32.mxu0 0.0
      %418 = vmatmul.mubr.f32.gmra.mrb[0].mxu0 %v324
      %v419 = vpop.f32.mrb[0].mxu0
      %v420 = vadd.f32 %v346, %v419
      %v421 = vpop.f32.mrb[0].mxu0
      %422 = vdwg.mxu0
      %423 = vst [vmem:[%s226] sm:$0xff] %v415
      %424 = vst [vmem:[%s226 + $0x8] sm:$0xff] %v420
      %s425 = smul.u32 2, %s16
      %p426 = scmp.lt.s32.totalorder %s425, 5
      %s427 = scalar_select %p426, %s425, 5
      %s428 = smul.addr %s427, 8
      %s429 = scalar_lea.vmem %s5, %s428
      // Predicated region
      $region41: #{merge_layer_forward.1} parent=39 // pred_check
        %p430 = pneg %p144
      $region42: #{merge_layer_forward.1} parent=39 // pred_check_branch
        %432 = sbr.rel (%p430) target = $region44
      $region43: #{merge_layer_forward.1} parent=39 // pred_region
        %s433 = smul.u32 2, %s16
      $region44: #{merge_layer_forward.1} parent=39 // pred_fallthru
        _
    $region40: #{merge_layer_forward.1} parent=5 // pred_fallthru
      _
    %p434 = scmp.le.s32.totalorder 2, %s11
    // Predicated region
    $region45: #{merge_layer_forward.1} parent=5 // pred_check
      %p435 = pneg %p434
    $region46: #{merge_layer_forward.1} parent=5 // pred_check_branch
      %437 = sbr.rel (%p435) target = $region48
    $region47: #{merge_layer_forward.1} parent=5 // pred_region
      %s438 = ssub.s32 %s11, 2
      // Predicated region
      $region49: #{merge_layer_forward.1} parent=47 // pred_check
        %p439 = pneg %p150
      $region50: #{merge_layer_forward.1} parent=47 // pred_check_branch
        %441 = sbr.rel (%p439) target = $region52
      $region51: #{merge_layer_forward.1} parent=47 // pred_region
        %s442 = smul.u32 2, %s17
        %p443 = scmp.lt.s32.totalorder %s442, 5
        %s444 = scalar_select %p443, %s442, 5
        %s445 = smul.addr %s444, 8
        %s446 = scalar_lea.vmem %s5, %s445
      $region52: #{merge_layer_forward.1} parent=47 // pred_fallthru
        _
    $region48: #{merge_layer_forward.1} parent=5 // pred_fallthru
      _
  $region6: #{merge_layer_forward.1} parent=0 // loop_footer
    %s15 = sadd.s32 1, %s11
  $region7: #{merge_layer_forward.1} parent=0 // loop_footer_branch
    %10 = sbr.rel target = $region3
  $region8: #{merge_layer_forward.1} parent=0 // loop_exit
    _

</llo_original>
